<compile_context>
chip_gen: v7x
topology: tpu7x:2x2x1
jax: 0.10.0
libtpu: 0.0.40
codegen_flags: <defaults>
</compile_context>

<pallas_src>
import jax
import jax.numpy as jnp
from jax.experimental import pallas as pl
from jax.experimental.pallas import tpu as pltpu


INPUT_DIM = 512
HIDDEN_DIM = 256
OUTPUT_DIM = 128
BN_EPS = 1e-5


def projection_head_kernel(
    x_ref,    # (B, INPUT_DIM)        bf16
    w1_ref,   # (INPUT_DIM, HIDDEN)   bf16  (pre-transposed: in x out)
    p1_ref,   # (3, HIDDEN)           f32   rows = [bias1, gamma1, beta1]
    w2_ref,   # (HIDDEN, OUTPUT)      bf16  (pre-transposed: in x out)
    p2_ref,   # (3, OUTPUT)           f32   rows = [bias2, gamma2, beta2]
    o_ref,    # (B, OUTPUT)           f32
):
    inv_b = jnp.float32(1.0 / x_ref.shape[0])

    p1 = p1_ref[...]
    b1, g1, beta1 = p1[0:1], p1[1:2], p1[2:3]

    # ---- Linear(input -> hidden): bf16 operands, f32 accumulation on the MXU ----
    h = jnp.dot(x_ref[...], w1_ref[...], preferred_element_type=jnp.float32) + b1

    # ---- BatchNorm1d(hidden), training-mode batch stats (single pass, f32) ----
    s1 = jnp.sum(h, axis=0, keepdims=True)
    s2 = jnp.sum(h * h, axis=0, keepdims=True)
    mean = s1 * inv_b
    var = s2 * inv_b - mean * mean          # biased variance
    scale = g1 * jax.lax.rsqrt(var + BN_EPS)
    shift = beta1 - mean * scale
    h = h * scale + shift                   # folded normalize + affine (1 FMA/elem)

    # ---- ReLU ----
    h = jnp.maximum(h, 0.0)

    p2 = p2_ref[...]
    b2, g2, beta2 = p2[0:1], p2[1:2], p2[2:3]

    # ---- Linear(hidden -> output): bf16 operands, f32 accumulation ----
    z = jnp.dot(h.astype(jnp.bfloat16), w2_ref[...],
                preferred_element_type=jnp.float32) + b2

    # ---- BatchNorm1d(output), training-mode batch stats ----
    s1 = jnp.sum(z, axis=0, keepdims=True)
    s2 = jnp.sum(z * z, axis=0, keepdims=True)
    mean = s1 * inv_b
    var = s2 * inv_b - mean * mean
    scale = g2 * jax.lax.rsqrt(var + BN_EPS)
    shift = beta2 - mean * scale
    o_ref[...] = (z * scale + shift).astype(o_ref.dtype)


def projection_head(x, params):
    """x: (B, INPUT_DIM) float32. Returns (B, OUTPUT_DIM) float32."""
    B = x.shape[0]
    w1, b1, g1, beta1, w2, b2, g2, beta2 = params

    # bf16 matmul operands (weights should be cast once and kept resident by
    # the caller; under jit these casts are hoisted out of the hot path).
    x_bf16 = x.astype(jnp.bfloat16)
    w1_bf16 = w1.astype(jnp.bfloat16)
    w2_bf16 = w2.astype(jnp.bfloat16)

    # Pack the six tiny per-feature vectors into two refs (fewer small DMAs).
    p1 = jnp.concatenate([b1, g1, beta1], axis=0)   # (3, HIDDEN_DIM) f32
    p2 = jnp.concatenate([b2, g2, beta2], axis=0)   # (3, OUTPUT_DIM) f32

    vmem = lambda: pl.BlockSpec(memory_space=pltpu.MemorySpace.VMEM)

    return pl.pallas_call(
        projection_head_kernel,
        out_shape=jax.ShapeDtypeStruct((B, OUTPUT_DIM), jnp.float32),
        in_specs=[vmem(), vmem(), vmem(), vmem(), vmem()],
        out_specs=vmem(),
    )(x_bf16, w1_bf16, p1, w2_bf16, p2)


def init_params(key):
    """Deterministic parameter init (shapes match the PyTorch module)."""
    k1, k2, k3, k4 = jax.random.split(key, 4)
    # Linear weights stored pre-transposed: (in, out)
    w1 = jax.random.normal(k1, (INPUT_DIM, HIDDEN_DIM), jnp.float32) * 0.02
    b1 = jax.random.normal(k2, (1, HIDDEN_DIM), jnp.float32) * 0.01
    w2 = jax.random.normal(k3, (HIDDEN_DIM, OUTPUT_DIM), jnp.float32) * 0.02
    b2 = jax.random.normal(k4, (1, OUTPUT_DIM), jnp.float32) * 0.01
    # BatchNorm affine params (PyTorch default init: gamma=1, beta=0)
    g1 = jnp.ones((1, HIDDEN_DIM), jnp.float32)
    beta1 = jnp.zeros((1, HIDDEN_DIM), jnp.float32)
    g2 = jnp.ones((1, OUTPUT_DIM), jnp.float32)
    beta2 = jnp.zeros((1, OUTPUT_DIM), jnp.float32)
    return (w1, b1, g1, beta1, w2, b2, g2, beta2)


def reference(x, params):
    """Plain-JAX f32 reference of the same forward pass."""
    w1, b1, g1, beta1, w2, b2, g2, beta2 = params
    h = x @ w1 + b1
    m = h.mean(0, keepdims=True)
    v = ((h - m) ** 2).mean(0, keepdims=True)
    h = (h - m) * jax.lax.rsqrt(v + BN_EPS) * g1 + beta1
    h = jnp.maximum(h, 0.0)
    z = h @ w2 + b2
    m = z.mean(0, keepdims=True)
    v = ((z - m) ** 2).mean(0, keepdims=True)
    return (z - m) * jax.lax.rsqrt(v + BN_EPS) * g2 + beta2


if __name__ == "__main__":
    key = jax.random.PRNGKey(0)
    kx, kp = jax.random.split(key)

    B = 8  # batch (>=2 so training-mode BatchNorm is well defined)
    x = jax.random.normal(kx, (B, INPUT_DIM), jnp.float32)
    params = init_params(kp)

    out = jax.block_until_ready(jax.jit(projection_head)(x, params))
    ref = reference(x, params)

    assert out.shape == (B, OUTPUT_DIM)
    assert out.dtype == jnp.float32
    # bf16 matmul operands loosen agreement with the pure-f32 reference.
    assert jnp.allclose(out, ref, atol=5e-2, rtol=5e-2), float(
        jnp.max(jnp.abs(out - ref))
    )

    print("KERNEL_OK")
</pallas_src>

<mosaic_0001>
module attributes {stable_mosaic.version = 11 : i64} {
  func.func @projection_head_kernel(%arg0: memref<8x512xbf16, #tpu.memory_space<vmem>>, %arg1: memref<512x256xbf16, #tpu.memory_space<vmem>>, %arg2: memref<3x256xf32, #tpu.memory_space<vmem>>, %arg3: memref<256x128xbf16, #tpu.memory_space<vmem>>, %arg4: memref<3x128xf32, #tpu.memory_space<vmem>>, %arg5: memref<8x128xf32, #tpu.memory_space<vmem>>) attributes {dimension_semantics = [], scalar_prefetch = 0 : i64, scratch_operands = 0 : i64, tpu.core_type = #tpu.core_type<tc>} {
    %c0 = arith.constant 0 : index
    %c0_0 = arith.constant 0 : index
    %0 = vector.load %arg2[%c0, %c0_0] : memref<3x256xf32, #tpu.memory_space<vmem>>, vector<3x256xf32>
    %1 = vector.extract_strided_slice %0 {offsets = [0, 0], sizes = [1, 256], strides = [1, 1]} : vector<3x256xf32> to vector<1x256xf32>
    %2 = vector.extract_strided_slice %0 {offsets = [1, 0], sizes = [1, 256], strides = [1, 1]} : vector<3x256xf32> to vector<1x256xf32>
    %3 = vector.extract_strided_slice %0 {offsets = [2, 0], sizes = [1, 256], strides = [1, 1]} : vector<3x256xf32> to vector<1x256xf32>
    %c0_1 = arith.constant 0 : index
    %c0_2 = arith.constant 0 : index
    %4 = vector.load %arg0[%c0_1, %c0_2] : memref<8x512xbf16, #tpu.memory_space<vmem>>, vector<8x512xbf16>
    %c0_3 = arith.constant 0 : index
    %c0_4 = arith.constant 0 : index
    %5 = vector.load %arg1[%c0_3, %c0_4] : memref<512x256xbf16, #tpu.memory_space<vmem>>, vector<512x256xbf16>
    %cst = arith.constant dense<0.000000e+00> : vector<8x256xf32>
    %6 = tpu.matmul %4, %5, %cst {dimension_numbers = #tpu.dot_dimension_numbers<[1], [0], [0], [1], [0, 0, 1, 1], [], []>} : vector<8x512xbf16>, vector<512x256xbf16>, vector<8x256xf32> -> vector<8x256xf32>
    %7 = vector.broadcast %1 : vector<1x256xf32> to vector<8x256xf32>
    %8 = arith.addf %6, %7 : vector<8x256xf32>
    %cst_5 = arith.constant dense<0.000000e+00> : vector<256xf32>
    %9 = vector.multi_reduction <add>, %8, %cst_5 [0] : vector<8x256xf32> to vector<256xf32>
    %10 = vector.shape_cast %9 : vector<256xf32> to vector<1x256xf32>
    %11 = arith.mulf %8, %8 : vector<8x256xf32>
    %cst_6 = arith.constant dense<0.000000e+00> : vector<256xf32>
    %12 = vector.multi_reduction <add>, %11, %cst_6 [0] : vector<8x256xf32> to vector<256xf32>
    %13 = vector.shape_cast %12 : vector<256xf32> to vector<1x256xf32>
    %cst_7 = arith.constant 1.250000e-01 : f32
    %14 = vector.broadcast %cst_7 : f32 to vector<1x256xf32>
    %15 = arith.mulf %10, %14 : vector<1x256xf32>
    %cst_8 = arith.constant 1.250000e-01 : f32
    %16 = vector.broadcast %cst_8 : f32 to vector<1x256xf32>
    %17 = arith.mulf %13, %16 : vector<1x256xf32>
    %18 = arith.mulf %15, %15 : vector<1x256xf32>
    %19 = arith.subf %17, %18 : vector<1x256xf32>
    %cst_9 = arith.constant 9.99999974E-6 : f32
    %20 = vector.broadcast %cst_9 : f32 to vector<1x256xf32>
    %21 = arith.addf %19, %20 : vector<1x256xf32>
    %22 = math.rsqrt %21 : vector<1x256xf32>
    %23 = arith.mulf %2, %22 : vector<1x256xf32>
    %24 = arith.mulf %15, %23 : vector<1x256xf32>
    %25 = arith.subf %3, %24 : vector<1x256xf32>
    %26 = vector.broadcast %23 : vector<1x256xf32> to vector<8x256xf32>
    %27 = arith.mulf %8, %26 : vector<8x256xf32>
    %28 = vector.broadcast %25 : vector<1x256xf32> to vector<8x256xf32>
    %29 = arith.addf %27, %28 : vector<8x256xf32>
    %cst_10 = arith.constant 0.000000e+00 : f32
    %30 = vector.broadcast %cst_10 : f32 to vector<8x256xf32>
    %31 = arith.maximumf %29, %30 : vector<8x256xf32>
    %c0_11 = arith.constant 0 : index
    %c0_12 = arith.constant 0 : index
    %32 = vector.load %arg4[%c0_11, %c0_12] : memref<3x128xf32, #tpu.memory_space<vmem>>, vector<3x128xf32>
    %33 = vector.extract_strided_slice %32 {offsets = [0, 0], sizes = [1, 128], strides = [1, 1]} : vector<3x128xf32> to vector<1x128xf32>
    %34 = vector.extract_strided_slice %32 {offsets = [1, 0], sizes = [1, 128], strides = [1, 1]} : vector<3x128xf32> to vector<1x128xf32>
    %35 = vector.extract_strided_slice %32 {offsets = [2, 0], sizes = [1, 128], strides = [1, 1]} : vector<3x128xf32> to vector<1x128xf32>
    %36 = arith.truncf %31 : vector<8x256xf32> to vector<8x256xbf16>
    %c0_13 = arith.constant 0 : index
    %c0_14 = arith.constant 0 : index
    %37 = vector.load %arg3[%c0_13, %c0_14] : memref<256x128xbf16, #tpu.memory_space<vmem>>, vector<256x128xbf16>
    %cst_15 = arith.constant dense<0.000000e+00> : vector<8x128xf32>
    %38 = tpu.matmul %36, %37, %cst_15 {dimension_numbers = #tpu.dot_dimension_numbers<[1], [0], [0], [1], [0, 0, 1, 1], [], []>} : vector<8x256xbf16>, vector<256x128xbf16>, vector<8x128xf32> -> vector<8x128xf32>
    %39 = vector.broadcast %33 : vector<1x128xf32> to vector<8x128xf32>
    %40 = arith.addf %38, %39 : vector<8x128xf32>
    %cst_16 = arith.constant dense<0.000000e+00> : vector<128xf32>
    %41 = vector.multi_reduction <add>, %40, %cst_16 [0] : vector<8x128xf32> to vector<128xf32>
    %42 = vector.shape_cast %41 : vector<128xf32> to vector<1x128xf32>
    %43 = arith.mulf %40, %40 : vector<8x128xf32>
    %cst_17 = arith.constant dense<0.000000e+00> : vector<128xf32>
    %44 = vector.multi_reduction <add>, %43, %cst_17 [0] : vector<8x128xf32> to vector<128xf32>
    %45 = vector.shape_cast %44 : vector<128xf32> to vector<1x128xf32>
    %cst_18 = arith.constant 1.250000e-01 : f32
    %46 = vector.broadcast %cst_18 : f32 to vector<1x128xf32>
    %47 = arith.mulf %42, %46 : vector<1x128xf32>
    %cst_19 = arith.constant 1.250000e-01 : f32
    %48 = vector.broadcast %cst_19 : f32 to vector<1x128xf32>
    %49 = arith.mulf %45, %48 : vector<1x128xf32>
    %50 = arith.mulf %47, %47 : vector<1x128xf32>
    %51 = arith.subf %49, %50 : vector<1x128xf32>
    %cst_20 = arith.constant 9.99999974E-6 : f32
    %52 = vector.broadcast %cst_20 : f32 to vector<1x128xf32>
    %53 = arith.addf %51, %52 : vector<1x128xf32>
    %54 = math.rsqrt %53 : vector<1x128xf32>
    %55 = arith.mulf %34, %54 : vector<1x128xf32>
    %56 = arith.mulf %47, %55 : vector<1x128xf32>
    %57 = arith.subf %35, %56 : vector<1x128xf32>
    %58 = vector.broadcast %55 : vector<1x128xf32> to vector<8x128xf32>
    %59 = arith.mulf %40, %58 : vector<8x128xf32>
    %60 = vector.broadcast %57 : vector<1x128xf32> to vector<8x128xf32>
    %61 = arith.addf %59, %60 : vector<8x128xf32>
    %c0_21 = arith.constant 0 : index
    %c0_22 = arith.constant 0 : index
    %62 = vector.load %arg5[%c0_21, %c0_22] : memref<8x128xf32, #tpu.memory_space<vmem>>, vector<8x128xf32>
    tpu.vector_store %arg5[%c0_21, %c0_22], %61 {strides = array<i32>} : memref<8x128xf32, #tpu.memory_space<vmem>>, vector<8x128xf32>,
    return
  }
}

</mosaic_0001>

<llo_original>
// kernel: projection_head.1
$region0: #{projection_head.1}
  #allocation0 [shape = 'u32[]', space=smem, size = 0x4, offset = 0x4, fixed_abs, tag = 'smem constant byte address 0x4 - core index']
  #allocation1 [shape = 'u32[144,128]{1,0:T(1,128)}', space=vmem, size = 0x12000, scoped, tag = 'internal scratch']
  %s0 = inlined_call_operand.vmem [shape: bf16[8,512], index: 0, kind: input, shape index: {}]
  %s1 = inlined_call_operand.vmem [shape: bf16[512,256], index: 1, kind: input, shape index: {}]
  %s2 = inlined_call_operand.vmem [shape: f32[3,256], index: 2, kind: input, shape index: {}]
  %s3 = inlined_call_operand.vmem [shape: bf16[256,128], index: 3, kind: input, shape index: {}]
  %s4 = inlined_call_operand.vmem [shape: f32[3,128], index: 4, kind: input, shape index: {}]
  %s5 = inlined_call_operand.hbm [shape: f32[8,128], index: 5, kind: output, shape index: {}]
  %s6 = sld [smem:[#allocation0]]
  $region30: #{projection_head.1} parent=0
    _
  %s8 = ssub.s32 1, %s6
  %s9 = scalar_select 0, %s8, %s6
  $region1: #{projection_head.1} parent=0
    #allocation2 [shape = 'u8[4096]{0}', space=vmem, size = 0x1000, scoped, tag = 'output window, operand 0, single buffered']
    #allocation3 [shape = 's32[1]{0}', space=sflag, size = 0x4, scoped, tag = 'scoped memory for projection_head.1']
    %10 = vsyncpa [#allocation3], 0
    // Predicated region
    $region2: #{projection_head.1} parent=1 // pred_check
      _
    $region3: #{projection_head.1} parent=1 // pred_check_branch
      %12 = sbr.rel (0) target = $region5
    $region4: #{projection_head.1} parent=1 // pred_region
      _
    $region5: #{projection_head.1} parent=1 // pred_fallthru
      _
    // Predicated region
    $region6: #{projection_head.1} parent=1 // pred_check
      _
    $region7: #{projection_head.1} parent=1 // pred_check_branch
      %14 = sbr.rel (0) target = $region9
    $region8: #{projection_head.1} parent=1 // pred_region
      _
    $region9: #{projection_head.1} parent=1 // pred_fallthru
      _
    // Predicated region
    $region10: #{projection_head.1} parent=1 // pred_check
      _
    $region11: #{projection_head.1} parent=1 // pred_check_branch
      %16 = sbr.rel (0) target = $region13
    $region12: #{projection_head.1} parent=1 // pred_region
      _
    $region13: #{projection_head.1} parent=1 // pred_fallthru
      _
    // Predicated region
    $region14: #{projection_head.1} parent=1 // pred_check
      _
    $region15: #{projection_head.1} parent=1 // pred_check_branch
      %18 = sbr.rel (0) target = $region17
    $region16: #{projection_head.1} parent=1 // pred_region
      _
    $region17: #{projection_head.1} parent=1 // pred_fallthru
      _
    // Predicated region
    $region18: #{projection_head.1} parent=1 // pred_check
      _
    $region19: #{projection_head.1} parent=1 // pred_check_branch
      %20 = sbr.rel (0) target = $region21
    $region20: #{projection_head.1} parent=1 // pred_region
      _
    $region21: #{projection_head.1} parent=1 // pred_fallthru
      _
    %v22 = vld [vmem:[%s2] sm:$0x77]
    %v23 = vld [vmem:[%s0] sm:$0xff]
    %v24 = vld [vmem:[%s0 + $0x8] sm:$0xff]
    %v25 = vld [vmem:[%s1] sm:$0xff]
    %v26 = vld [vmem:[%s1 + $0x8] sm:$0xff]
    %v27 = vld [vmem:[%s1 + $0x10] sm:$0xff]
    %v28 = vld [vmem:[%s1 + $0x18] sm:$0xff]
    %v29 = vld [vmem:[%s1 + $0x20] sm:$0xff]
    %v30 = vld [vmem:[%s1 + $0x28] sm:$0xff]
    %v31 = vld [vmem:[%s1 + $0x30] sm:$0xff]
    %v32 = vld [vmem:[%s1 + $0x38] sm:$0xff]
    %v33 = vld [vmem:[%s1 + $0x40] sm:$0xff]
    %v34 = vld [vmem:[%s1 + $0x48] sm:$0xff]
    %v35 = vld [vmem:[%s1 + $0x50] sm:$0xff]
    %v36 = vld [vmem:[%s1 + $0x58] sm:$0xff]
    %v37 = vld [vmem:[%s1 + $0x60] sm:$0xff]
    %v38 = vld [vmem:[%s1 + $0x68] sm:$0xff]
    %v39 = vld [vmem:[%s1 + $0x70] sm:$0xff]
    %v40 = vld [vmem:[%s1 + $0x78] sm:$0xff]
    %v41 = vld [vmem:[%s1 + $0x80] sm:$0xff]
    %v42 = vld [vmem:[%s1 + $0x88] sm:$0xff]
    %v43 = vld [vmem:[%s1 + $0x90] sm:$0xff]
    %v44 = vld [vmem:[%s1 + $0x98] sm:$0xff]
    %v45 = vld [vmem:[%s1 + $0xa0] sm:$0xff]
    %v46 = vld [vmem:[%s1 + $0xa8] sm:$0xff]
    %v47 = vld [vmem:[%s1 + $0xb0] sm:$0xff]
    %v48 = vld [vmem:[%s1 + $0xb8] sm:$0xff]
    %v49 = vld [vmem:[%s1 + $0xc0] sm:$0xff]
    %v50 = vld [vmem:[%s1 + $0xc8] sm:$0xff]
    %v51 = vld [vmem:[%s1 + $0xd0] sm:$0xff]
    %v52 = vld [vmem:[%s1 + $0xd8] sm:$0xff]
    %v53 = vld [vmem:[%s1 + $0xe0] sm:$0xff]
    %v54 = vld [vmem:[%s1 + $0xe8] sm:$0xff]
    %v55 = vld [vmem:[%s1 + $0xf0] sm:$0xff]
    %v56 = vld [vmem:[%s1 + $0xf8] sm:$0xff]
    %v57 = vld [vmem:[%s1 + $0x100] sm:$0xff]
    %v58 = vld [vmem:[%s1 + $0x108] sm:$0xff]
    %v59 = vld [vmem:[%s1 + $0x110] sm:$0xff]
    %v60 = vld [vmem:[%s1 + $0x118] sm:$0xff]
    %v61 = vld [vmem:[%s1 + $0x120] sm:$0xff]
    %v62 = vld [vmem:[%s1 + $0x128] sm:$0xff]
    %v63 = vld [vmem:[%s1 + $0x130] sm:$0xff]
    %v64 = vld [vmem:[%s1 + $0x138] sm:$0xff]
    %v65 = vld [vmem:[%s1 + $0x140] sm:$0xff]
    %v66 = vld [vmem:[%s1 + $0x148] sm:$0xff]
    %v67 = vld [vmem:[%s1 + $0x150] sm:$0xff]
    %v68 = vld [vmem:[%s1 + $0x158] sm:$0xff]
    %v69 = vld [vmem:[%s1 + $0x160] sm:$0xff]
    %v70 = vld [vmem:[%s1 + $0x168] sm:$0xff]
    %v71 = vld [vmem:[%s1 + $0x170] sm:$0xff]
    %v72 = vld [vmem:[%s1 + $0x178] sm:$0xff]
    %v73 = vld [vmem:[%s1 + $0x180] sm:$0xff]
    %v74 = vld [vmem:[%s1 + $0x188] sm:$0xff]
    %v75 = vld [vmem:[%s1 + $0x190] sm:$0xff]
    %v76 = vld [vmem:[%s1 + $0x198] sm:$0xff]
    %v77 = vld [vmem:[%s1 + $0x1a0] sm:$0xff]
    %v78 = vld [vmem:[%s1 + $0x1a8] sm:$0xff]
    %v79 = vld [vmem:[%s1 + $0x1b0] sm:$0xff]
    %v80 = vld [vmem:[%s1 + $0x1b8] sm:$0xff]
    %v81 = vld [vmem:[%s1 + $0x1c0] sm:$0xff]
    %v82 = vld [vmem:[%s1 + $0x1c8] sm:$0xff]
    %v83 = vld [vmem:[%s1 + $0x1d0] sm:$0xff]
    %v84 = vld [vmem:[%s1 + $0x1d8] sm:$0xff]
    %v85 = vld [vmem:[%s1 + $0x1e0] sm:$0xff]
    %v86 = vld [vmem:[%s1 + $0x1e8] sm:$0xff]
    %v87 = vld [vmem:[%s1 + $0x1f0] sm:$0xff]
    %v88 = vld [vmem:[%s1 + $0x1f8] sm:$0xff]
    %v90 = vlaneseq
    %v91 = vshrl.u32 %v90, 7
    %v92 = vsub.s32 0, %v91
    %v93 = vrot.slane %v22, %v92
    %v94 = vlaneseq
    %v95 = vshrl.u32 %v94, 7
    %v96 = vsub.s32 4, %v95
    %v97 = vrot.slane %v22, %v96
    %v100 = vlaneseq
    %v101 = vshrl.u32 %v100, 7
    %v102 = vsub.s32 0, %v101
    %v103 = vrot.slane %v93, %v102
    %v104 = vlaneseq
    %v105 = vshrl.u32 %v104, 7
    %v106 = vsub.s32 0, %v105
    %v107 = vrot.slane %v97, %v106
    %v110 = vunpack.c.l.b16 %v23
    %v111 = vunpack.c.h.b16 %v23
    %v112 = vunpack.c.l.b16 %v24
    %v113 = vunpack.c.h.b16 %v24
    %v114 = vpack.c.b16 %v110, %v110
    %v115 = vpack.c.b16 %v111, %v111
    %v116 = vpack.c.b16 %v112, %v112
    %v117 = vpack.c.b16 %v113, %v113
    %v186 = vunpack.c.l.b16 %v25
    %v187 = vunpack.c.h.b16 %v25
    %v188 = vunpack.c.l.b16 %v26
    %v189 = vunpack.c.h.b16 %v26
    %v190 = vunpack.c.l.b16 %v27
    %v191 = vunpack.c.h.b16 %v27
    %v192 = vunpack.c.l.b16 %v28
    %v193 = vunpack.c.h.b16 %v28
    %v194 = vunpack.c.l.b16 %v29
    %v195 = vunpack.c.h.b16 %v29
    %v196 = vunpack.c.l.b16 %v30
    %v197 = vunpack.c.h.b16 %v30
    %v198 = vunpack.c.l.b16 %v31
    %v199 = vunpack.c.h.b16 %v31
    %v200 = vunpack.c.l.b16 %v32
    %v201 = vunpack.c.h.b16 %v32
    %v202 = vunpack.c.l.b16 %v33
    %v203 = vunpack.c.h.b16 %v33
    %v204 = vunpack.c.l.b16 %v34
    %v205 = vunpack.c.h.b16 %v34
    %v206 = vunpack.c.l.b16 %v35
    %v207 = vunpack.c.h.b16 %v35
    %v208 = vunpack.c.l.b16 %v36
    %v209 = vunpack.c.h.b16 %v36
    %v210 = vunpack.c.l.b16 %v37
    %v211 = vunpack.c.h.b16 %v37
    %v212 = vunpack.c.l.b16 %v38
    %v213 = vunpack.c.h.b16 %v38
    %v214 = vunpack.c.l.b16 %v39
    %v215 = vunpack.c.h.b16 %v39
    %v216 = vunpack.c.l.b16 %v40
    %v217 = vunpack.c.h.b16 %v40
    %v218 = vunpack.c.l.b16 %v41
    %v219 = vunpack.c.h.b16 %v41
    %v220 = vunpack.c.l.b16 %v42
    %v221 = vunpack.c.h.b16 %v42
    %v222 = vunpack.c.l.b16 %v43
    %v223 = vunpack.c.h.b16 %v43
    %v224 = vunpack.c.l.b16 %v44
    %v225 = vunpack.c.h.b16 %v44
    %v226 = vunpack.c.l.b16 %v45
    %v227 = vunpack.c.h.b16 %v45
    %v228 = vunpack.c.l.b16 %v46
    %v229 = vunpack.c.h.b16 %v46
    %v230 = vunpack.c.l.b16 %v47
    %v231 = vunpack.c.h.b16 %v47
    %v232 = vunpack.c.l.b16 %v48
    %v233 = vunpack.c.h.b16 %v48
    %v234 = vunpack.c.l.b16 %v49
    %v235 = vunpack.c.h.b16 %v49
    %v236 = vunpack.c.l.b16 %v50
    %v237 = vunpack.c.h.b16 %v50
    %v238 = vunpack.c.l.b16 %v51
    %v239 = vunpack.c.h.b16 %v51
    %v240 = vunpack.c.l.b16 %v52
    %v241 = vunpack.c.h.b16 %v52
    %v242 = vunpack.c.l.b16 %v53
    %v243 = vunpack.c.h.b16 %v53
    %v244 = vunpack.c.l.b16 %v54
    %v245 = vunpack.c.h.b16 %v54
    %v246 = vunpack.c.l.b16 %v55
    %v247 = vunpack.c.h.b16 %v55
    %v248 = vunpack.c.l.b16 %v56
    %v249 = vunpack.c.h.b16 %v56
    %v250 = vunpack.c.l.b16 %v57
    %v251 = vunpack.c.h.b16 %v57
    %v252 = vunpack.c.l.b16 %v58
    %v253 = vunpack.c.h.b16 %v58
    %v254 = vunpack.c.l.b16 %v59
    %v255 = vunpack.c.h.b16 %v59
    %v256 = vunpack.c.l.b16 %v60
    %v257 = vunpack.c.h.b16 %v60
    %v258 = vunpack.c.l.b16 %v61
    %v259 = vunpack.c.h.b16 %v61
    %v260 = vunpack.c.l.b16 %v62
    %v261 = vunpack.c.h.b16 %v62
    %v262 = vunpack.c.l.b16 %v63
    %v263 = vunpack.c.h.b16 %v63
    %v264 = vunpack.c.l.b16 %v64
    %v265 = vunpack.c.h.b16 %v64
    %v266 = vunpack.c.l.b16 %v65
    %v267 = vunpack.c.h.b16 %v65
    %v268 = vunpack.c.l.b16 %v66
    %v269 = vunpack.c.h.b16 %v66
    %v270 = vunpack.c.l.b16 %v67
    %v271 = vunpack.c.h.b16 %v67
    %v272 = vunpack.c.l.b16 %v68
    %v273 = vunpack.c.h.b16 %v68
    %v274 = vunpack.c.l.b16 %v69
    %v275 = vunpack.c.h.b16 %v69
    %v276 = vunpack.c.l.b16 %v70
    %v277 = vunpack.c.h.b16 %v70
    %v278 = vunpack.c.l.b16 %v71
    %v279 = vunpack.c.h.b16 %v71
    %v280 = vunpack.c.l.b16 %v72
    %v281 = vunpack.c.h.b16 %v72
    %v282 = vunpack.c.l.b16 %v73
    %v283 = vunpack.c.h.b16 %v73
    %v284 = vunpack.c.l.b16 %v74
    %v285 = vunpack.c.h.b16 %v74
    %v286 = vunpack.c.l.b16 %v75
    %v287 = vunpack.c.h.b16 %v75
    %v288 = vunpack.c.l.b16 %v76
    %v289 = vunpack.c.h.b16 %v76
    %v290 = vunpack.c.l.b16 %v77
    %v291 = vunpack.c.h.b16 %v77
    %v292 = vunpack.c.l.b16 %v78
    %v293 = vunpack.c.h.b16 %v78
    %v294 = vunpack.c.l.b16 %v79
    %v295 = vunpack.c.h.b16 %v79
    %v296 = vunpack.c.l.b16 %v80
    %v297 = vunpack.c.h.b16 %v80
    %v298 = vunpack.c.l.b16 %v81
    %v299 = vunpack.c.h.b16 %v81
    %v300 = vunpack.c.l.b16 %v82
    %v301 = vunpack.c.h.b16 %v82
    %v302 = vunpack.c.l.b16 %v83
    %v303 = vunpack.c.h.b16 %v83
    %v304 = vunpack.c.l.b16 %v84
    %v305 = vunpack.c.h.b16 %v84
    %v306 = vunpack.c.l.b16 %v85
    %v307 = vunpack.c.h.b16 %v85
    %v308 = vunpack.c.l.b16 %v86
    %v309 = vunpack.c.h.b16 %v86
    %v310 = vunpack.c.l.b16 %v87
    %v311 = vunpack.c.h.b16 %v87
    %v312 = vunpack.c.l.b16 %v88
    %v313 = vunpack.c.h.b16 %v88
    %v314 = vpack.c.b16 %v188, %v186
    %v315 = vpack.c.b16 %v189, %v187
    %v316 = vpack.c.b16 %v192, %v190
    %v317 = vpack.c.b16 %v193, %v191
    %v318 = vpack.c.b16 %v196, %v194
    %v319 = vpack.c.b16 %v197, %v195
    %v320 = vpack.c.b16 %v200, %v198
    %v321 = vpack.c.b16 %v201, %v199
    %v322 = vpack.c.b16 %v204, %v202
    %v323 = vpack.c.b16 %v205, %v203
    %v324 = vpack.c.b16 %v208, %v206
    %v325 = vpack.c.b16 %v209, %v207
    %v326 = vpack.c.b16 %v212, %v210
    %v327 = vpack.c.b16 %v213, %v211
    %v328 = vpack.c.b16 %v216, %v214
    %v329 = vpack.c.b16 %v217, %v215
    %v330 = vpack.c.b16 %v220, %v218
    %v331 = vpack.c.b16 %v221, %v219
    %v332 = vpack.c.b16 %v224, %v222
    %v333 = vpack.c.b16 %v225, %v223
    %v334 = vpack.c.b16 %v228, %v226
    %v335 = vpack.c.b16 %v229, %v227
    %v336 = vpack.c.b16 %v232, %v230
    %v337 = vpack.c.b16 %v233, %v231
    %v338 = vpack.c.b16 %v236, %v234
    %v339 = vpack.c.b16 %v237, %v235
    %v340 = vpack.c.b16 %v240, %v238
    %v341 = vpack.c.b16 %v241, %v239
    %v342 = vpack.c.b16 %v244, %v242
    %v343 = vpack.c.b16 %v245, %v243
    %v344 = vpack.c.b16 %v248, %v246
    %v345 = vpack.c.b16 %v249, %v247
    %v346 = vpack.c.b16 %v252, %v250
    %v347 = vpack.c.b16 %v253, %v251
    %v348 = vpack.c.b16 %v256, %v254
    %v349 = vpack.c.b16 %v257, %v255
    %v350 = vpack.c.b16 %v260, %v258
    %v351 = vpack.c.b16 %v261, %v259
    %v352 = vpack.c.b16 %v264, %v262
    %v353 = vpack.c.b16 %v265, %v263
    %v354 = vpack.c.b16 %v268, %v266
    %v355 = vpack.c.b16 %v269, %v267
    %v356 = vpack.c.b16 %v272, %v270
    %v357 = vpack.c.b16 %v273, %v271
    %v358 = vpack.c.b16 %v276, %v274
    %v359 = vpack.c.b16 %v277, %v275
    %v360 = vpack.c.b16 %v280, %v278
    %v361 = vpack.c.b16 %v281, %v279
    %v362 = vpack.c.b16 %v284, %v282
    %v363 = vpack.c.b16 %v285, %v283
    %v364 = vpack.c.b16 %v288, %v286
    %v365 = vpack.c.b16 %v289, %v287
    %v366 = vpack.c.b16 %v292, %v290
    %v367 = vpack.c.b16 %v293, %v291
    %v368 = vpack.c.b16 %v296, %v294
    %v369 = vpack.c.b16 %v297, %v295
    %v370 = vpack.c.b16 %v300, %v298
    %v371 = vpack.c.b16 %v301, %v299
    %v372 = vpack.c.b16 %v304, %v302
    %v373 = vpack.c.b16 %v305, %v303
    %v374 = vpack.c.b16 %v308, %v306
    %v375 = vpack.c.b16 %v309, %v307
    %v376 = vpack.c.b16 %v312, %v310
    %v377 = vpack.c.b16 %v313, %v311
    %442 = vmatprep.subr.bf16.mxu0 %v315
    %443 = vmatpush1.bf16.msra.mxu0 %v314
    %444 = vmatprep.subr.bf16.mxu0 %v317
    %445 = vmatpush1.bf16.msra.mxu0 %v316
    %446 = vmatprep.subr.bf16.mxu0 %v319
    %447 = vmatpush1.bf16.msra.mxu0 %v318
    %448 = vmatprep.subr.bf16.mxu0 %v321
    %449 = vmatpush1.bf16.msra.mxu0 %v320
    %450 = vmatprep.subr.bf16.mxu0 %v323
    %451 = vmatpush1.bf16.msra.mxu0 %v322
    %452 = vmatprep.subr.bf16.mxu0 %v325
    %453 = vmatpush1.bf16.msra.mxu0 %v324
    %454 = vmatprep.subr.bf16.mxu0 %v327
    %455 = vmatpush1.bf16.msra.mxu0 %v326
    %456 = vmatprep.subr.bf16.mxu0 %v329
    %457 = vmatpush1.bf16.msra.mxu0 %v328
    %458 = vmatprep.subr.bf16.mxu0 %v331
    %459 = vmatpush1.bf16.msra.mxu0 %v330
    %460 = vmatprep.subr.bf16.mxu0 %v333
    %461 = vmatpush1.bf16.msra.mxu0 %v332
    %462 = vmatprep.subr.bf16.mxu0 %v335
    %463 = vmatpush1.bf16.msra.mxu0 %v334
    %464 = vmatprep.subr.bf16.mxu0 %v337
    %465 = vmatpush1.bf16.msra.mxu0 %v336
    %466 = vmatprep.subr.bf16.mxu0 %v339
    %467 = vmatpush1.bf16.msra.mxu0 %v338
    %468 = vmatprep.subr.bf16.mxu0 %v341
    %469 = vmatpush1.bf16.msra.mxu0 %v340
    %470 = vmatprep.subr.bf16.mxu0 %v343
    %471 = vmatpush1.bf16.msra.mxu0 %v342
    %472 = vmatprep.subr.bf16.mxu0 %v345
    %473 = vmatpush1.bf16.msra.mxu0 %v344
    %474 = vmatprep.mubr.bf16.mxu0 %v115
    %475 = vmatmul.mubr.bf16.gmra.mrb[0].mxu0 %v114
    %v476 = vpop.f32.mrb[0].mxu0
    %v477 = vadd.f32 %v103, %v476
    %v478 = vpop.f32.mrb[0].mxu0
    %v479 = vadd.f32 %v107, %v478
    %v480 = vpop.f32.mrb[0].mxu0
    %v481 = vpop.f32.mrb[0].mxu0
    %482 = vdwg.mxu0
    %483 = vmatprep.subr.bf16.mxu0 %v347
    %484 = vmatpush1.bf16.msra.mxu0 %v346
    %485 = vmatprep.subr.bf16.mxu0 %v349
    %486 = vmatpush1.bf16.msra.mxu0 %v348
    %487 = vmatprep.subr.bf16.mxu0 %v351
    %488 = vmatpush1.bf16.msra.mxu0 %v350
    %489 = vmatprep.subr.bf16.mxu0 %v353
    %490 = vmatpush1.bf16.msra.mxu0 %v352
    %491 = vmatprep.subr.bf16.mxu0 %v355
    %492 = vmatpush1.bf16.msra.mxu0 %v354
    %493 = vmatprep.subr.bf16.mxu0 %v357
    %494 = vmatpush1.bf16.msra.mxu0 %v356
    %495 = vmatprep.subr.bf16.mxu0 %v359
    %496 = vmatpush1.bf16.msra.mxu0 %v358
    %497 = vmatprep.subr.bf16.mxu0 %v361
    %498 = vmatpush1.bf16.msra.mxu0 %v360
    %499 = vmatprep.subr.bf16.mxu0 %v363
    %500 = vmatpush1.bf16.msra.mxu0 %v362
    %501 = vmatprep.subr.bf16.mxu0 %v365
    %502 = vmatpush1.bf16.msra.mxu0 %v364
    %503 = vmatprep.subr.bf16.mxu0 %v367
    %504 = vmatpush1.bf16.msra.mxu0 %v366
    %505 = vmatprep.subr.bf16.mxu0 %v369
    %506 = vmatpush1.bf16.msra.mxu0 %v368
    %507 = vmatprep.subr.bf16.mxu0 %v371
    %508 = vmatpush1.bf16.msra.mxu0 %v370
    %509 = vmatprep.subr.bf16.mxu0 %v373
    %510 = vmatpush1.bf16.msra.mxu0 %v372
    %511 = vmatprep.subr.bf16.mxu0 %v375
    %512 = vmatpush1.bf16.msra.mxu0 %v374
    %513 = vmatprep.subr.bf16.mxu0 %v377
    %514 = vmatpush1.bf16.msra.mxu0 %v376
    %515 = vmatprep.mubr.bf16.mxu0 %v117
    %516 = vmatmul.mubr.bf16.gmra.mrb[0].mxu0 %v116
    %v517 = vpop.f32.mrb[0].mxu0
    %v518 = vadd.f32 %v477, %v517
    %v519 = vpop.f32.mrb[0].mxu0
    %v520 = vadd.f32 %v479, %v519
    %v521 = vpop.f32.mrb[0].mxu0
    %v522 = vpop.f32.mrb[0].mxu0
    %523 = vdwg.mxu0
    %v524 = vrot.slane %v518, 4
    %v525 = vadd.f32 %v518, %v524
    %v526 = vrot.slane %v525, 2
    %v527 = vadd.f32 %v525, %v526
    %v528 = vrot.slane %v527, 1
    %v529 = vadd.f32 %v527, %v528
    %v530 = vrot.slane %v520, 4
    %v531 = vadd.f32 %v520, %v530
    %v532 = vrot.slane %v531, 2
    %v533 = vadd.f32 %v531, %v532
    %v534 = vrot.slane %v533, 1
    %v535 = vadd.f32 %v533, %v534
    %v536 = vmul.f32 %v518, %v518
    %v537 = vmul.f32 %v520, %v520
    %v538 = vrot.slane %v536, 4
    %v539 = vadd.f32 %v536, %v538
    %v540 = vrot.slane %v539, 2
    %v541 = vadd.f32 %v539, %v540
    %v542 = vrot.slane %v541, 1
    %v543 = vadd.f32 %v541, %v542
    %v544 = vrot.slane %v537, 4
    %v545 = vadd.f32 %v537, %v544
    %v546 = vrot.slane %v545, 2
    %v547 = vadd.f32 %v545, %v546
    %v548 = vrot.slane %v547, 1
    %v549 = vadd.f32 %v547, %v548
    %v550 = vmul.f32 %v529, 0.125
    %v551 = vmul.f32 %v535, 0.125
    %v552 = vmul.f32 %v543, 0.125
    %v553 = vmul.f32 %v549, 0.125
    %v554 = vmul.f32 %v550, %v550
    %v555 = vmul.f32 %v551, %v551
    %v556 = vsub.f32 %v552, %v554
    %v557 = vsub.f32 %v553, %v555
    %v558 = vadd.f32 %v556, 1e-05
    %v559 = vadd.f32 %v557, 1e-05
    %v560 = vrsqrt.pop %v558
    %v561 = vrsqrt.pop %v559
    %v564 = vcombine.low %v560, %v561
    %v565 = vrot.slane %v564, 7
    %v567 = vmul.f32 %v22, %v565
    %v569 = vlaneseq
    %v570 = vshrl.u32 %v569, 7
    %v571 = vsub.s32 1, %v570
    %v572 = vrot.slane %v567, %v571
    %v573 = vlaneseq
    %v574 = vshrl.u32 %v573, 7
    %v575 = vsub.s32 5, %v574
    %v576 = vrot.slane %v567, %v575
    %v579 = vmul.f32 %v550, %v572
    %v580 = vmul.f32 %v551, %v576
    %v583 = vcombine.low %v579, %v580
    %v584 = vrot.slane %v583, 6
    %v586 = vsub.f32 %v22, %v584
    %v587 = vlaneseq
    %v588 = vshrl.u32 %v587, 7
    %v589 = vsub.s32 1, %v588
    %v590 = vrot.slane %v572, %v589
    %v591 = vlaneseq
    %v592 = vshrl.u32 %v591, 7
    %v593 = vsub.s32 1, %v592
    %v594 = vrot.slane %v576, %v593
    %v595 = vmul.f32 %v518, %v590
    %v596 = vmul.f32 %v520, %v594
    %v598 = vlaneseq
    %v599 = vshrl.u32 %v598, 7
    %v600 = vsub.s32 2, %v599
    %v601 = vrot.slane %v586, %v600
    %v602 = vlaneseq
    %v603 = vshrl.u32 %v602, 7
    %v604 = vsub.s32 6, %v603
    %v605 = vrot.slane %v586, %v604
    %v608 = vlaneseq
    %v609 = vshrl.u32 %v608, 7
    %v610 = vsub.s32 2, %v609
    %v611 = vrot.slane %v601, %v610
    %v612 = vlaneseq
    %v613 = vshrl.u32 %v612, 7
    %v614 = vsub.s32 2, %v613
    %v615 = vrot.slane %v605, %v614
    %v616 = vadd.f32 %v595, %v611
    %v617 = vadd.f32 %v596, %v615
    %v618 = vmax.f32 %v616, 0.0
    %v619 = vmax.f32 %v617, 0.0
    %v620 = vld [vmem:[%s4] sm:$0x7]
    %v621 = vpack.c.bf16 %v618, %v618
    %v622 = vpack.c.bf16 %v619, %v619
    %v623 = vld [vmem:[%s3] sm:$0xf]
    %v624 = vld [vmem:[%s3 + $0x4] sm:$0xf]
    %v625 = vld [vmem:[%s3 + $0x8] sm:$0xf]
    %v626 = vld [vmem:[%s3 + $0xc] sm:$0xf]
    %v627 = vld [vmem:[%s3 + $0x10] sm:$0xf]
    %v628 = vld [vmem:[%s3 + $0x14] sm:$0xf]
    %v629 = vld [vmem:[%s3 + $0x18] sm:$0xf]
    %v630 = vld [vmem:[%s3 + $0x1c] sm:$0xf]
    %v631 = vld [vmem:[%s3 + $0x20] sm:$0xf]
    %v632 = vld [vmem:[%s3 + $0x24] sm:$0xf]
    %v633 = vld [vmem:[%s3 + $0x28] sm:$0xf]
    %v634 = vld [vmem:[%s3 + $0x2c] sm:$0xf]
    %v635 = vld [vmem:[%s3 + $0x30] sm:$0xf]
    %v636 = vld [vmem:[%s3 + $0x34] sm:$0xf]
    %v637 = vld [vmem:[%s3 + $0x38] sm:$0xf]
    %v638 = vld [vmem:[%s3 + $0x3c] sm:$0xf]
    %v639 = vld [vmem:[%s3 + $0x40] sm:$0xf]
    %v640 = vld [vmem:[%s3 + $0x44] sm:$0xf]
    %v641 = vld [vmem:[%s3 + $0x48] sm:$0xf]
    %v642 = vld [vmem:[%s3 + $0x4c] sm:$0xf]
    %v643 = vld [vmem:[%s3 + $0x50] sm:$0xf]
    %v644 = vld [vmem:[%s3 + $0x54] sm:$0xf]
    %v645 = vld [vmem:[%s3 + $0x58] sm:$0xf]
    %v646 = vld [vmem:[%s3 + $0x5c] sm:$0xf]
    %v647 = vld [vmem:[%s3 + $0x60] sm:$0xf]
    %v648 = vld [vmem:[%s3 + $0x64] sm:$0xf]
    %v649 = vld [vmem:[%s3 + $0x68] sm:$0xf]
    %v650 = vld [vmem:[%s3 + $0x6c] sm:$0xf]
    %v651 = vld [vmem:[%s3 + $0x70] sm:$0xf]
    %v652 = vld [vmem:[%s3 + $0x74] sm:$0xf]
    %v653 = vld [vmem:[%s3 + $0x78] sm:$0xf]
    %v654 = vld [vmem:[%s3 + $0x7c] sm:$0xf]
    %v655 = vlaneseq
    %v656 = vshrl.u32 %v655, 7
    %v657 = vsub.s32 0, %v656
    %v658 = vrot.slane %v620, %v657
    %v691 = vunpack.c.l.b16 %v623
    %v692 = vunpack.c.l.b16 %v624
    %v693 = vunpack.c.l.b16 %v625
    %v694 = vunpack.c.l.b16 %v626
    %v695 = vunpack.c.l.b16 %v627
    %v696 = vunpack.c.l.b16 %v628
    %v697 = vunpack.c.l.b16 %v629
    %v698 = vunpack.c.l.b16 %v630
    %v699 = vunpack.c.l.b16 %v631
    %v700 = vunpack.c.l.b16 %v632
    %v701 = vunpack.c.l.b16 %v633
    %v702 = vunpack.c.l.b16 %v634
    %v703 = vunpack.c.l.b16 %v635
    %v704 = vunpack.c.l.b16 %v636
    %v705 = vunpack.c.l.b16 %v637
    %v706 = vunpack.c.l.b16 %v638
    %v707 = vunpack.c.l.b16 %v639
    %v708 = vunpack.c.l.b16 %v640
    %v709 = vunpack.c.l.b16 %v641
    %v710 = vunpack.c.l.b16 %v642
    %v711 = vunpack.c.l.b16 %v643
    %v712 = vunpack.c.l.b16 %v644
    %v713 = vunpack.c.l.b16 %v645
    %v714 = vunpack.c.l.b16 %v646
    %v715 = vunpack.c.l.b16 %v647
    %v716 = vunpack.c.l.b16 %v648
    %v717 = vunpack.c.l.b16 %v649
    %v718 = vunpack.c.l.b16 %v650
    %v719 = vunpack.c.l.b16 %v651
    %v720 = vunpack.c.l.b16 %v652
    %v721 = vunpack.c.l.b16 %v653
    %v722 = vunpack.c.l.b16 %v654
    %v723 = vpack.c.b16 %v692, %v691
    %v724 = vpack.c.b16 %v694, %v693
    %v725 = vpack.c.b16 %v696, %v695
    %v726 = vpack.c.b16 %v698, %v697
    %v727 = vpack.c.b16 %v700, %v699
    %v728 = vpack.c.b16 %v702, %v701
    %v729 = vpack.c.b16 %v704, %v703
    %v730 = vpack.c.b16 %v706, %v705
    %v731 = vpack.c.b16 %v708, %v707
    %v732 = vpack.c.b16 %v710, %v709
    %v733 = vpack.c.b16 %v712, %v711
    %v734 = vpack.c.b16 %v714, %v713
    %v735 = vpack.c.b16 %v716, %v715
    %v736 = vpack.c.b16 %v718, %v717
    %v737 = vpack.c.b16 %v720, %v719
    %v738 = vpack.c.b16 %v722, %v721
    %755 = vmatprep.subr.bf16.mxu0 0
    %756 = vmatpush1.bf16.msra.mxu0 %v723
    %757 = vmatprep.subr.bf16.mxu0 0
    %758 = vmatpush1.bf16.msra.mxu0 %v724
    %759 = vmatprep.subr.bf16.mxu0 0
    %760 = vmatpush1.bf16.msra.mxu0 %v725
    %761 = vmatprep.subr.bf16.mxu0 0
    %762 = vmatpush1.bf16.msra.mxu0 %v726
    %763 = vmatprep.subr.bf16.mxu0 0
    %764 = vmatpush1.bf16.msra.mxu0 %v727
    %765 = vmatprep.subr.bf16.mxu0 0
    %766 = vmatpush1.bf16.msra.mxu0 %v728
    %767 = vmatprep.subr.bf16.mxu0 0
    %768 = vmatpush1.bf16.msra.mxu0 %v729
    %769 = vmatprep.subr.bf16.mxu0 0
    %770 = vmatpush1.bf16.msra.mxu0 %v730
    %771 = vmatprep.subr.bf16.mxu0 0
    %772 = vmatpush1.bf16.msra.mxu0 %v731
    %773 = vmatprep.subr.bf16.mxu0 0
    %774 = vmatpush1.bf16.msra.mxu0 %v732
    %775 = vmatprep.subr.bf16.mxu0 0
    %776 = vmatpush1.bf16.msra.mxu0 %v733
    %777 = vmatprep.subr.bf16.mxu0 0
    %778 = vmatpush1.bf16.msra.mxu0 %v734
    %779 = vmatprep.subr.bf16.mxu0 0
    %780 = vmatpush1.bf16.msra.mxu0 %v735
    %781 = vmatprep.subr.bf16.mxu0 0
    %782 = vmatpush1.bf16.msra.mxu0 %v736
    %783 = vmatprep.subr.bf16.mxu0 0
    %784 = vmatpush1.bf16.msra.mxu0 %v737
    %785 = vmatprep.subr.bf16.mxu0 0
    %786 = vmatpush1.bf16.msra.mxu0 %v738
    %787 = vmatprep.mubr.bf16.mxu0 %v622
    %788 = vmatmul.mubr.bf16.gmra.mrb[0].mxu0 %v621
    %v789 = vpop.f32.mrb[0].mxu0
    %v790 = vadd.f32 %v658, %v789
    %v791 = vpop.f32.mrb[0].mxu0
    %v792 = vpop.f32.mrb[0].mxu0
    %v793 = vpop.f32.mrb[0].mxu0
    %794 = vdwg.mxu0
    %v795 = vrot.slane %v790, 4
    %v796 = vadd.f32 %v790, %v795
    %v797 = vrot.slane %v796, 2
    %v798 = vadd.f32 %v796, %v797
    %v799 = vrot.slane %v798, 1
    %v800 = vadd.f32 %v798, %v799
    %v801 = vmul.f32 %v790, %v790
    %v802 = vrot.slane %v801, 4
    %v803 = vadd.f32 %v801, %v802
    %v804 = vrot.slane %v803, 2
    %v805 = vadd.f32 %v803, %v804
    %v806 = vrot.slane %v805, 1
    %v807 = vadd.f32 %v805, %v806
    %v808 = vmul.f32 %v800, 0.125
    %v809 = vmul.f32 %v807, 0.125
    %v810 = vmul.f32 %v808, %v808
    %v811 = vsub.f32 %v809, %v810
    %v812 = vadd.f32 %v811, 1e-05
    %v813 = vrsqrt.pop %v812
    %v814 = vmul.f32 %v620, %v813
    %v815 = vmul.f32 %v808, %v814
    %v817 = vrot.slane %v815, 7
    %v819 = vsub.f32 %v620, %v817
    %v820 = vlaneseq
    %v821 = vshrl.u32 %v820, 7
    %v822 = vsub.s32 1, %v821
    %v823 = vrot.slane %v814, %v822
    %v824 = vmul.f32 %v790, %v823
    %v825 = vlaneseq
    %v826 = vshrl.u32 %v825, 7
    %v827 = vsub.s32 2, %v826
    %v828 = vrot.slane %v819, %v827
    %v829 = vadd.f32 %v824, %v828
    %830 = vst [vmem:[#allocation2] sm:$0xff] %v829
    // Predicated region
    $region22: #{projection_head.1} parent=1 // pred_check
      _
    $region23: #{projection_head.1} parent=1 // pred_check_branch
      %832 = sbr.rel (0) target = $region25
    $region24: #{projection_head.1} parent=1 // pred_region
      %s834 = ssub.s32 128, 128
      %835 = vsyncadd [#allocation3], %s834
      %s837 = sshll.u32 [#allocation2], 4
      %s838 = int_to_ptr.vmem [resolvable:$true] %s837
      %840 = dma.vmem_to_hbm [thread:$0]  %s838, 128, %s5, [#allocation3]
    $region25: #{projection_head.1} parent=1 // pred_fallthru
      _
    // Predicated region
    $region26: #{projection_head.1} parent=1 // pred_check
      _
    $region27: #{projection_head.1} parent=1 // pred_check_branch
      %842 = sbr.rel (0) target = $region29
    $region28: #{projection_head.1} parent=1 // pred_region
      %843 = dma.done [#allocation3], 128
    $region29: #{projection_head.1} parent=1 // pred_fallthru
      _
    %844 = vsyncpa [#allocation3], 1

</llo_original>
